<compile_context>
chip_gen: v5e
topology: v5e:2x2
jax: 0.10.0
libtpu: 0.0.40
codegen_flags: <defaults>
</compile_context>

<pallas_src>
import functools

import jax
import jax.numpy as jnp
from jax.experimental import pallas as pl
from jax.experimental.pallas import tpu as pltpu


# ---------------------------------------------------------------------------
# Kernels
# ---------------------------------------------------------------------------

def _gru_ode_fused_kernel(x_ref, w_ref, b_ref, h_ref, dh_ref, *, mxu_dtype):
    """H % 128 == 0 path: one fused MXU matmul, vreg-aligned gate split.

    x:[bB,K], w:[K,2H], b:[1,2H], h:[bB,H] -> dh:[bB,H].
    """
    H = h_ref.shape[-1]
    x = x_ref[...]
    w = w_ref[...]
    if mxu_dtype is not None:
        # In-kernel cast (VMEM only, no extra HBM pass); f32 accumulation below.
        x = x.astype(mxu_dtype)
        w = w.astype(mxu_dtype)
    b = b_ref[...].astype(jnp.float32)
    h = h_ref[...].astype(jnp.float32)

    lin = jnp.dot(x, w, preferred_element_type=jnp.float32) + b       # [bB,2H]
    z_lin = lin[:, :H]                    # lane-aligned: H is a multiple of 128
    h_lin = lin[:, H:]
    # (1 - sigmoid(z)) == sigmoid(-z); both transcendentals ride the EUP slot.
    dh = jax.nn.sigmoid(-z_lin) * (jnp.tanh(h_lin) - h)
    dh_ref[...] = dh.astype(dh_ref.dtype)


def _gru_ode_split_kernel(x_ref, wz_ref, wh_ref, bz_ref, bh_ref, h_ref, dh_ref,
                          *, mxu_dtype):
    """General path (H % 128 != 0): two matmuls on whole arrays, no lane slicing."""
    x = x_ref[...]
    wz = wz_ref[...]
    wh = wh_ref[...]
    if mxu_dtype is not None:
        x = x.astype(mxu_dtype)
        wz = wz.astype(mxu_dtype)
        wh = wh.astype(mxu_dtype)
    bz = bz_ref[...].astype(jnp.float32)
    bh = bh_ref[...].astype(jnp.float32)
    h = h_ref[...].astype(jnp.float32)

    z_lin = jnp.dot(x, wz, preferred_element_type=jnp.float32) + bz
    h_lin = jnp.dot(x, wh, preferred_element_type=jnp.float32) + bh
    dh = jax.nn.sigmoid(-z_lin) * (jnp.tanh(h_lin) - h)
    dh_ref[...] = dh.astype(dh_ref.dtype)


# ---------------------------------------------------------------------------
# Parameter preparation (call ONCE, outside any ODE time loop)
# ---------------------------------------------------------------------------

def prepare_joint_gru_params(W_z, W_h, b_z, b_h):
    """Pre-fuse gate parameters once (hoisted out of the per-step forward).

    Returns a tuple of arrays; its length encodes the kernel variant:
      len == 2: (W=[K,2H], b=[1,2H])      -- fused-gate kernel (H % 128 == 0)
      len == 4: (W_z, W_h, b_z[1,H], b_h[1,H]) -- split kernel (general H)
    """
    K, H = W_z.shape
    assert W_h.shape == (K, H) and b_z.shape == (H,) and b_h.shape == (H,)
    if H % 128 == 0:
        W = jnp.concatenate([W_z, W_h], axis=1)                    # [K, 2H]
        b = jnp.concatenate([b_z, b_h], axis=0).reshape(1, 2 * H)  # [1, 2H]
        return (W, b)
    return (W_z, W_h, b_z.reshape(1, H), b_h.reshape(1, H))


# ---------------------------------------------------------------------------
# Tile-size / VMEM helpers
# ---------------------------------------------------------------------------

def _choose_block_b(B, K, H, in_bytes, out_bytes, *, row_align,
                    cap=1024, tile_budget_bytes=12 * 1024 * 1024):
    """Largest batch tile (row-aligned divisor of B, <= cap) whose
    double-buffered x/h/dh tiles fit the budget; prefer >=2 grid steps so the
    "parallel" batch axis can feed both v7x TensorCores."""
    def fits(bb):
        per_step = (2 * bb * K * in_bytes          # x tile, double-buffered
                    + 2 * bb * H * in_bytes        # h tile
                    + 2 * bb * H * out_bytes)      # dh tile
        return per_step <= tile_budget_bytes

    candidates = [bb for bb in range(row_align, min(B, cap) + 1, row_align)
                  if B % bb == 0 and fits(bb)]
    if not candidates:
        return B                        # whole batch in one grid step
    multi = [bb for bb in candidates if B // bb >= 2]
    return max(multi) if multi else max(candidates)


def _vmem_limit_bytes(block_b, K, H, in_bytes, out_bytes, weight_bytes):
    per_step = (2 * block_b * K * in_bytes
                + 2 * block_b * H * in_bytes
                + 2 * block_b * H * out_bytes)
    est = per_step + weight_bytes
    # 2x headroom; floor at 16 MiB, cap well under v7x's 64 MiB/TC physical.
    return int(min(max(2 * est, 16 * 1024 * 1024), 48 * 1024 * 1024))


# ---------------------------------------------------------------------------
# Forward
# ---------------------------------------------------------------------------

@functools.partial(jax.jit, static_argnames=("block_b", "mxu_dtype"))
def joint_gru_ode_cell(params, mgn_h_tilde, joint_h, *,
                       block_b=None, mxu_dtype=None):
    """Pallas forward of joint_GRUODECell.forward(t, mgn_h_tilde, joint_h).

    params:    output of prepare_joint_gru_params (pre-fused, built once).
    block_b:   optional batch tile override (must divide B; row-aligned).
    mxu_dtype: optional MXU-operand dtype (e.g. jnp.bfloat16), cast in-kernel;
               accumulation / bias / activations stay f32 (v5e-safe).
    """
    B, K = mgn_h_tilde.shape
    H = joint_h.shape[-1]
    assert joint_h.shape == (B, H)
    out_dtype = mgn_h_tilde.dtype

    in_bytes = jnp.dtype(mgn_h_tilde.dtype).itemsize
    out_bytes = jnp.dtype(out_dtype).itemsize
    row_align = {4: 8, 2: 16, 1: 32}.get(in_bytes, 8)

    if block_b is None:
        block_b = _choose_block_b(B, K, H, in_bytes, out_bytes,
                                  row_align=row_align)
    assert B % block_b == 0, "block_b must divide B"
    assert block_b == B or block_b % row_align == 0, (
        f"block_b must be a multiple of {row_align} for this dtype")
    grid = (B // block_b,)

    x_spec = pl.BlockSpec((block_b, K), lambda i: (i, 0))
    h_spec = pl.BlockSpec((block_b, H), lambda i: (i, 0))
    out_spec = pl.BlockSpec((block_b, H), lambda i: (i, 0))

    weight_bytes = sum(int(p.size) * jnp.dtype(p.dtype).itemsize for p in params)
    vmem_limit = _vmem_limit_bytes(block_b, K, H, in_bytes, out_bytes,
                                   weight_bytes)

    if len(params) == 2:            # fused-gate path (H % 128 == 0)
        W, b = params
        kernel = functools.partial(_gru_ode_fused_kernel, mxu_dtype=mxu_dtype)
        in_specs = [
            x_spec,
            pl.BlockSpec((K, 2 * H), lambda i: (0, 0)),   # W: VMEM-resident
            pl.BlockSpec((1, 2 * H), lambda i: (0, 0)),   # b: VMEM-resident
            h_spec,
        ]
        args = (mgn_h_tilde, W, b, joint_h)
    else:                           # split path (general H, e.g. H=32)
        W_z, W_h, b_z, b_h = params
        kernel = functools.partial(_gru_ode_split_kernel, mxu_dtype=mxu_dtype)
        in_specs = [
            x_spec,
            pl.BlockSpec((K, H), lambda i: (0, 0)),       # W_z: VMEM-resident
            pl.BlockSpec((K, H), lambda i: (0, 0)),       # W_h: VMEM-resident
            pl.BlockSpec((1, H), lambda i: (0, 0)),       # b_z
            pl.BlockSpec((1, H), lambda i: (0, 0)),       # b_h
            h_spec,
        ]
        args = (mgn_h_tilde, W_z, W_h, b_z, b_h, joint_h)

    return pl.pallas_call(
        kernel,
        out_shape=jax.ShapeDtypeStruct((B, H), out_dtype),
        grid_spec=pltpu.PrefetchScalarGridSpec(
            num_scalar_prefetch=0,
            grid=grid,
            in_specs=in_specs,
            out_specs=out_spec,
        ),
        compiler_params=pltpu.CompilerParams(
            dimension_semantics=("parallel",),
            vmem_limit_bytes=vmem_limit,
        ),
    )(*args)


# ---------------------------------------------------------------------------
# Demo / self-test
# ---------------------------------------------------------------------------

def _xavier_uniform(key, shape, dtype=jnp.float32):
    fan_in, fan_out = shape
    limit = (6.0 / (fan_in + fan_out)) ** 0.5
    return jax.random.uniform(key, shape, dtype, minval=-limit, maxval=limit)


def _reference(mgn_h_tilde, W_z, W_h, b_z, b_h, joint_h):
    z = jax.nn.sigmoid(mgn_h_tilde @ W_z + b_z)
    ht = jnp.tanh(mgn_h_tilde @ W_h + b_h)
    return (1.0 - z) * (ht - joint_h)


if __name__ == "__main__":
    key = jax.random.PRNGKey(0)

    # --- Case 1: module-sized shapes (input_size=8, n_dim=4, H=32, batch=16),
    #             H % 128 != 0 -> split kernel path.
    input_size, n_dim, H1, B1 = 8, 4, 32, 16
    K1 = input_size * n_dim
    k_wz, k_wh, k_x, k_h, k2 = jax.random.split(key, 5)
    W_z = _xavier_uniform(k_wz, (K1, H1))
    W_h = _xavier_uniform(k_wh, (K1, H1))
    b_z = jnp.zeros((H1,), jnp.float32)
    b_h = jnp.zeros((H1,), jnp.float32)
    x1 = jax.random.normal(k_x, (B1, K1), jnp.float32)
    h1 = jax.random.normal(k_h, (B1, H1), jnp.float32)

    params1 = prepare_joint_gru_params(W_z, W_h, b_z, b_h)   # hoisted, once
    ref1 = _reference(x1, W_z, W_h, b_z, b_h, h1)

    dh1 = jax.block_until_ready(joint_gru_ode_cell(params1, x1, h1))
    assert dh1.shape == (B1, H1)
    assert jnp.allclose(dh1, ref1, atol=1e-5, rtol=1e-5)

    # bf16 MXU operands, cast inside the kernel (f32 accumulation/activations).
    dh1_bf16 = jax.block_until_ready(
        joint_gru_ode_cell(params1, x1, h1, mxu_dtype=jnp.bfloat16))
    assert jnp.allclose(dh1_bf16, ref1, atol=5e-2, rtol=5e-2)

    # --- Case 2: H multiple of 128 -> fused-gate kernel path (still small).
    B2, K2, H2 = 32, 64, 128
    k_wz2, k_wh2, k_x2, k_h2 = jax.random.split(k2, 4)
    W_z2 = _xavier_uniform(k_wz2, (K2, H2))
    W_h2 = _xavier_uniform(k_wh2, (K2, H2))
    b_z2 = jnp.zeros((H2,), jnp.float32)
    b_h2 = jnp.zeros((H2,), jnp.float32)
    x2 = jax.random.normal(k_x2, (B2, K2), jnp.float32)
    h2 = jax.random.normal(k_h2, (B2, H2), jnp.float32)

    params2 = prepare_joint_gru_params(W_z2, W_h2, b_z2, b_h2)
    ref2 = _reference(x2, W_z2, W_h2, b_z2, b_h2, h2)

    dh2 = jax.block_until_ready(joint_gru_ode_cell(params2, x2, h2))
    assert dh2.shape == (B2, H2)
    assert jnp.allclose(dh2, ref2, atol=1e-5, rtol=1e-5)

    print("KERNEL_OK")
</pallas_src>

<mosaic_0001>
module attributes {stable_mosaic.version = 11 : i64} {
  func.func @_gru_ode_split_kernel(%arg0: i32, %arg1: memref<8x32xf32, #tpu.memory_space<vmem>>, %arg2: memref<32x32xf32, #tpu.memory_space<vmem>>, %arg3: memref<32x32xf32, #tpu.memory_space<vmem>>, %arg4: memref<1x32xf32, #tpu.memory_space<vmem>>, %arg5: memref<1x32xf32, #tpu.memory_space<vmem>>, %arg6: memref<8x32xf32, #tpu.memory_space<vmem>>, %arg7: memref<8x32xf32, #tpu.memory_space<vmem>>) attributes {dimension_semantics = [#tpu.dimension_semantics<parallel>], iteration_bounds = array<i64: 2>, scalar_prefetch = 0 : i64, scratch_operands = 0 : i64, tpu.core_type = #tpu.core_type<tc>, window_params = [{transform_indices = @transform_0, window_bounds = array<i64: 8, 32>}, {pipeline_mode = #tpu.pipeline_mode<synchronous>, transform_indices = @transform_1, window_bounds = array<i64: 32, 32>}, {pipeline_mode = #tpu.pipeline_mode<synchronous>, transform_indices = @transform_2, window_bounds = array<i64: 32, 32>}, {pipeline_mode = #tpu.pipeline_mode<synchronous>, transform_indices = @transform_3, window_bounds = array<i64: 1, 32>}, {pipeline_mode = #tpu.pipeline_mode<synchronous>, transform_indices = @transform_4, window_bounds = array<i64: 1, 32>}, {transform_indices = @transform_5, window_bounds = array<i64: 8, 32>}, {transform_indices = @transform_6, window_bounds = array<i64: 8, 32>}]} {
    %c0 = arith.constant 0 : index
    %c0_0 = arith.constant 0 : index
    %0 = vector.load %arg1[%c0, %c0_0] : memref<8x32xf32, #tpu.memory_space<vmem>>, vector<8x32xf32>
    %c0_1 = arith.constant 0 : index
    %c0_2 = arith.constant 0 : index
    %1 = vector.load %arg2[%c0_1, %c0_2] : memref<32x32xf32, #tpu.memory_space<vmem>>, vector<32x32xf32>
    %c0_3 = arith.constant 0 : index
    %c0_4 = arith.constant 0 : index
    %2 = vector.load %arg3[%c0_3, %c0_4] : memref<32x32xf32, #tpu.memory_space<vmem>>, vector<32x32xf32>
    %c0_5 = arith.constant 0 : index
    %c0_6 = arith.constant 0 : index
    %3 = vector.load %arg4[%c0_5, %c0_6] : memref<1x32xf32, #tpu.memory_space<vmem>>, vector<1x32xf32>
    %c0_7 = arith.constant 0 : index
    %c0_8 = arith.constant 0 : index
    %4 = vector.load %arg5[%c0_7, %c0_8] : memref<1x32xf32, #tpu.memory_space<vmem>>, vector<1x32xf32>
    %c0_9 = arith.constant 0 : index
    %c0_10 = arith.constant 0 : index
    %5 = vector.load %arg6[%c0_9, %c0_10] : memref<8x32xf32, #tpu.memory_space<vmem>>, vector<8x32xf32>
    %cst = arith.constant dense<0.000000e+00> : vector<8x32xf32>
    %6 = tpu.matmul %0, %1, %cst {dimension_numbers = #tpu.dot_dimension_numbers<[1], [0], [0], [1], [0, 0, 1, 1], [], []>} : vector<8x32xf32>, vector<32x32xf32>, vector<8x32xf32> -> vector<8x32xf32>
    %7 = vector.broadcast %3 : vector<1x32xf32> to vector<8x32xf32>
    %8 = arith.addf %6, %7 : vector<8x32xf32>
    %cst_11 = arith.constant dense<0.000000e+00> : vector<8x32xf32>
    %9 = tpu.matmul %0, %2, %cst_11 {dimension_numbers = #tpu.dot_dimension_numbers<[1], [0], [0], [1], [0, 0, 1, 1], [], []>} : vector<8x32xf32>, vector<32x32xf32>, vector<8x32xf32> -> vector<8x32xf32>
    %10 = vector.broadcast %4 : vector<1x32xf32> to vector<8x32xf32>
    %11 = arith.addf %9, %10 : vector<8x32xf32>
    %cst_12 = arith.constant 0.000000e+00 : f32
    %12 = vector.broadcast %cst_12 : f32 to vector<8x32xf32>
    %13 = arith.subf %12, %8 : vector<8x32xf32>
    %14 = arith.negf %13 : vector<8x32xf32>
    %15 = math.exp %14 : vector<8x32xf32>
    %cst_13 = arith.constant 1.000000e+00 : f32
    %16 = vector.broadcast %cst_13 : f32 to vector<8x32xf32>
    %17 = arith.addf %16, %15 : vector<8x32xf32>
    %18 = arith.divf %16, %17 : vector<8x32xf32>
    %19 = math.tanh %11 : vector<8x32xf32>
    %20 = arith.subf %19, %5 : vector<8x32xf32>
    %21 = arith.mulf %18, %20 : vector<8x32xf32>
    %c0_14 = arith.constant 0 : index
    %c0_15 = arith.constant 0 : index
    %22 = vector.load %arg7[%c0_14, %c0_15] : memref<8x32xf32, #tpu.memory_space<vmem>>, vector<8x32xf32>
    tpu.vector_store %arg7[%c0_14, %c0_15], %21 {strides = array<i32>} : memref<8x32xf32, #tpu.memory_space<vmem>>, vector<8x32xf32>,
    return
  }
  func.func @transform_0(%arg0: i32) -> (i32, i32) {
    %c0_i32 = arith.constant 0 : i32
    %c0_i32_0 = arith.constant 0 : i32
    return %arg0, %c0_i32 : i32, i32
  }
  func.func @transform_1(%arg0: i32) -> (i32, i32) {
    %c0_i32 = arith.constant 0 : i32
    %c0_i32_0 = arith.constant 0 : i32
    %c0_i32_1 = arith.constant 0 : i32
    return %c0_i32, %c0_i32_0 : i32, i32
  }
  func.func @transform_2(%arg0: i32) -> (i32, i32) {
    %c0_i32 = arith.constant 0 : i32
    %c0_i32_0 = arith.constant 0 : i32
    %c0_i32_1 = arith.constant 0 : i32
    return %c0_i32, %c0_i32_0 : i32, i32
  }
  func.func @transform_3(%arg0: i32) -> (i32, i32) {
    %c0_i32 = arith.constant 0 : i32
    %c0_i32_0 = arith.constant 0 : i32
    %c0_i32_1 = arith.constant 0 : i32
    return %c0_i32, %c0_i32_0 : i32, i32
  }
  func.func @transform_4(%arg0: i32) -> (i32, i32) {
    %c0_i32 = arith.constant 0 : i32
    %c0_i32_0 = arith.constant 0 : i32
    %c0_i32_1 = arith.constant 0 : i32
    return %c0_i32, %c0_i32_0 : i32, i32
  }
  func.func @transform_5(%arg0: i32) -> (i32, i32) {
    %c0_i32 = arith.constant 0 : i32
    %c0_i32_0 = arith.constant 0 : i32
    return %arg0, %c0_i32 : i32, i32
  }
  func.func @transform_6(%arg0: i32) -> (i32, i32) {
    %c0_i32 = arith.constant 0 : i32
    %c0_i32_0 = arith.constant 0 : i32
    return %arg0, %c0_i32 : i32, i32
  }
}

</mosaic_0001>

<llo_original>
// kernel: joint_gru_ode_cell.1
$region0: #{joint_gru_ode_cell.1}
  #allocation0 [shape = 'u32[]', space=smem, size = 0x4, offset = 0x4, fixed_abs, tag = 'smem constant byte address 0x4 - core index']
  #allocation1 [shape = 'u32[72,128]{1,0:T(1,128)}', space=vmem, size = 0x9000, scoped, tag = 'internal scratch']
  %s0 = inlined_call_operand.hbm [shape: f32[16,32], index: 0, kind: input, shape index: {}]
  %s1 = inlined_call_operand.hbm [shape: f32[32,32], index: 1, kind: input, shape index: {}]
  %s2 = inlined_call_operand.hbm [shape: f32[32,32], index: 2, kind: input, shape index: {}]
  %s3 = inlined_call_operand.vmem [shape: f32[1,32], index: 3, kind: input, shape index: {}]
  %s4 = inlined_call_operand.vmem [shape: f32[1,32], index: 4, kind: input, shape index: {}]
  %s5 = inlined_call_operand.hbm [shape: f32[16,32], index: 5, kind: input, shape index: {}]
  %s6 = inlined_call_operand.hbm [shape: f32[16,32], index: 6, kind: output, shape index: {}]
  %s7 = sld [smem:[#allocation0]]
  $region73: #{joint_gru_ode_cell.1} parent=0
    _
  %s9 = ssub.s32 1, %s7
  %s10 = scalar_select 0, %s9, %s7
  $region1: #{joint_gru_ode_cell.1} parent=0
    #allocation2 [shape = 'u8[8192]{0}', space=vmem, size = 0x2000, scoped, tag = 'input window, operand 0']
    #allocation3 [shape = 's32[2]{0}', space=sflag, size = 0x8, scoped, tag = 'scoped memory for joint_gru_ode_cell.1']
    #allocation4 [shape = 's32[2]{0}', space=sflag, size = 0x8, scoped, tag = 'scoped memory for joint_gru_ode_cell.1']
    #allocation5 [shape = 'u8[16384]{0}', space=vmem, size = 0x4000, scoped, tag = 'input window, operand 1, single buffered']
    #allocation6 [shape = 's32[1]{0}', space=sflag, size = 0x4, scoped, tag = 'scoped memory for joint_gru_ode_cell.1']
    #allocation7 [shape = 'u8[16384]{0}', space=vmem, size = 0x4000, scoped, tag = 'input window, operand 2, single buffered']
    #allocation8 [shape = 'u8[8192]{0}', space=vmem, size = 0x2000, scoped, tag = 'input window, operand 5']
    #allocation9 [shape = 's32[2]{0}', space=sflag, size = 0x8, scoped, tag = 'scoped memory for joint_gru_ode_cell.1']
    #allocation10 [shape = 'u8[8192]{0}', space=vmem, size = 0x2000, scoped, tag = 'output window, operand 0']
    %11 = vsyncpa [#allocation3], 0
    %s12 = scalar_lea.sflag [#allocation3], 1
    %13 = vsyncpa %s12, 0
    %14 = vsyncpa [#allocation6], 0
    %15 = vsyncpa [#allocation9], 0
    %s16 = scalar_lea.sflag [#allocation9], 1
    %17 = vsyncpa %s16, 0
    %18 = vsyncpa [#allocation4], 0
    %s19 = scalar_lea.sflag [#allocation4], 1
    %20 = vsyncpa %s19, 0
    loop: start=0, step=1, limit=4
    $region2: #{joint_gru_ode_cell.1} parent=1 // loop_pre_header
      _
    $region3: #{joint_gru_ode_cell.1} parent=1 // loop_header
      %s22 = sphi 0, %s26
      %p23 = scmp.ge.s32.totalorder %s22, 4
      %s32 = sphi 0, %s34
      %s35 = sphi 0, %s32
      %s36 = sphi 0, %s35
      %s52 = sphi 0, %s36
      %s56 = sphi 0, %s56
      %s58 = sphi 0, %s56
      %s59 = sphi 0, %s58
      %s73 = sphi 0, %s59
      %s77 = sphi 0, %s77
      %s79 = sphi 0, %s77
      %s80 = sphi 0, %s79
      %s94 = sphi 0, %s80
      %s98 = sphi 0, %s98
      %s100 = sphi 0, %s98
      %s101 = sphi 0, %s100
      %s115 = sphi 0, %s101
      %s119 = sphi 0, %s119
      %s121 = sphi 0, %s119
      %s122 = sphi 0, %s121
      %s136 = sphi 0, %s122
      %s142 = sphi 0, %s144
      %s145 = sphi 0, %s142
      %s146 = sphi 0, %s145
      %s162 = sphi 0, %s146
      %s168 = sphi 0, %s170
      %s171 = sphi 0, %s168
      %s172 = sphi 0, %s171
      %s188 = sphi 0, %s172
    $region4: #{joint_gru_ode_cell.1} parent=1 // loop_header_branch
      %25 = sbr.rel (%p23) target = $region8
    $region5: #{joint_gru_ode_cell.1} parent=1 // loop_body
      %s27 = ssub.s32 %s22, 1
      %s28 = ssub.s32 %s22, 2
      %s29 = sadd.s32 %s22, 1
      %s30 = ssub.s32 %s22, %s29
      %p31 = scmp.eq.s32.totalorder %s30, 0
      %s33 = sadd.s32 %s32, 1
      %s34 = scalar_select %p31, %s32, %s33
      %p37 = pneg %p31
      %p38 = scmp.eq.s32.totalorder %s22, 1
      %p39 = por %p37, %p38
      %p40 = scmp.ne.s32.totalorder %s32, %s35
      %p41 = scmp.eq.s32.totalorder %s22, 0
      %p42 = por %p40, %p41
      %p43 = scmp.ne.s32.totalorder %s32, %s35
      %p44 = scmp.eq.s32.totalorder %s27, 1
      %p45 = por %p43, %p44
      %p46 = scmp.ne.s32.totalorder %s35, %s36
      %p47 = scmp.eq.s32.totalorder %s27, 0
      %p48 = por %p46, %p47
      %p49 = scmp.ne.s32.totalorder %s35, %s36
      %p50 = scmp.eq.s32.totalorder %s28, 1
      %p51 = por %p49, %p50
      %p53 = scmp.ne.s32.totalorder %s36, %s52
      %p54 = scmp.eq.s32.totalorder %s28, 0
      %p55 = por %p53, %p54
      %s57 = sadd.s32 %s56, 1
      %p60 = scmp.eq.s32.totalorder %s22, 1
      %p61 = scmp.ne.s32.totalorder %s56, %s58
      %p62 = scmp.eq.s32.totalorder %s22, 0
      %p63 = por %p61, %p62
      %p64 = scmp.ne.s32.totalorder %s56, %s58
      %p65 = scmp.eq.s32.totalorder %s27, 1
      %p66 = por %p64, %p65
      %p67 = scmp.ne.s32.totalorder %s58, %s59
      %p68 = scmp.eq.s32.totalorder %s27, 0
      %p69 = por %p67, %p68
      %p70 = scmp.ne.s32.totalorder %s58, %s59
      %p71 = scmp.eq.s32.totalorder %s28, 1
      %p72 = por %p70, %p71
      %p74 = scmp.ne.s32.totalorder %s59, %s73
      %p75 = scmp.eq.s32.totalorder %s28, 0
      %p76 = por %p74, %p75
      %s78 = sadd.s32 %s77, 1
      %p81 = scmp.eq.s32.totalorder %s22, 1
      %p82 = scmp.ne.s32.totalorder %s77, %s79
      %p83 = scmp.eq.s32.totalorder %s22, 0
      %p84 = por %p82, %p83
      %p85 = scmp.ne.s32.totalorder %s77, %s79
      %p86 = scmp.eq.s32.totalorder %s27, 1
      %p87 = por %p85, %p86
      %p88 = scmp.ne.s32.totalorder %s79, %s80
      %p89 = scmp.eq.s32.totalorder %s27, 0
      %p90 = por %p88, %p89
      %p91 = scmp.ne.s32.totalorder %s79, %s80
      %p92 = scmp.eq.s32.totalorder %s28, 1
      %p93 = por %p91, %p92
      %p95 = scmp.ne.s32.totalorder %s80, %s94
      %p96 = scmp.eq.s32.totalorder %s28, 0
      %p97 = por %p95, %p96
      %s99 = sadd.s32 %s98, 1
      %p102 = scmp.eq.s32.totalorder %s22, 1
      %p103 = scmp.ne.s32.totalorder %s98, %s100
      %p104 = scmp.eq.s32.totalorder %s22, 0
      %p105 = por %p103, %p104
      %p106 = scmp.ne.s32.totalorder %s98, %s100
      %p107 = scmp.eq.s32.totalorder %s27, 1
      %p108 = por %p106, %p107
      %p109 = scmp.ne.s32.totalorder %s100, %s101
      %p110 = scmp.eq.s32.totalorder %s27, 0
      %p111 = por %p109, %p110
      %p112 = scmp.ne.s32.totalorder %s100, %s101
      %p113 = scmp.eq.s32.totalorder %s28, 1
      %p114 = por %p112, %p113
      %p116 = scmp.ne.s32.totalorder %s101, %s115
      %p117 = scmp.eq.s32.totalorder %s28, 0
      %p118 = por %p116, %p117
      %s120 = sadd.s32 %s119, 1
      %p123 = scmp.eq.s32.totalorder %s22, 1
      %p124 = scmp.ne.s32.totalorder %s119, %s121
      %p125 = scmp.eq.s32.totalorder %s22, 0
      %p126 = por %p124, %p125
      %p127 = scmp.ne.s32.totalorder %s119, %s121
      %p128 = scmp.eq.s32.totalorder %s27, 1
      %p129 = por %p127, %p128
      %p130 = scmp.ne.s32.totalorder %s121, %s122
      %p131 = scmp.eq.s32.totalorder %s27, 0
      %p132 = por %p130, %p131
      %p133 = scmp.ne.s32.totalorder %s121, %s122
      %p134 = scmp.eq.s32.totalorder %s28, 1
      %p135 = por %p133, %p134
      %p137 = scmp.ne.s32.totalorder %s122, %s136
      %p138 = scmp.eq.s32.totalorder %s28, 0
      %p139 = por %p137, %p138
      %s140 = ssub.s32 %s22, %s29
      %p141 = scmp.eq.s32.totalorder %s140, 0
      %s143 = sadd.s32 %s142, 1
      %s144 = scalar_select %p141, %s142, %s143
      %p147 = pneg %p141
      %p148 = scmp.eq.s32.totalorder %s22, 1
      %p149 = por %p147, %p148
      %p150 = scmp.ne.s32.totalorder %s142, %s145
      %p151 = scmp.eq.s32.totalorder %s22, 0
      %p152 = por %p150, %p151
      %p153 = scmp.ne.s32.totalorder %s142, %s145
      %p154 = scmp.eq.s32.totalorder %s27, 1
      %p155 = por %p153, %p154
      %p156 = scmp.ne.s32.totalorder %s145, %s146
      %p157 = scmp.eq.s32.totalorder %s27, 0
      %p158 = por %p156, %p157
      %p159 = scmp.ne.s32.totalorder %s145, %s146
      %p160 = scmp.eq.s32.totalorder %s28, 1
      %p161 = por %p159, %p160
      %p163 = scmp.ne.s32.totalorder %s146, %s162
      %p164 = scmp.eq.s32.totalorder %s28, 0
      %p165 = por %p163, %p164
      %s166 = ssub.s32 %s22, %s29
      %p167 = scmp.eq.s32.totalorder %s166, 0
      %s169 = sadd.s32 %s168, 1
      %s170 = scalar_select %p167, %s168, %s169
      %p173 = pneg %p167
      %p174 = scmp.eq.s32.totalorder %s22, 1
      %p175 = por %p173, %p174
      %p176 = scmp.ne.s32.totalorder %s168, %s171
      %p177 = scmp.eq.s32.totalorder %s22, 0
      %p178 = por %p176, %p177
      %p179 = scmp.ne.s32.totalorder %s168, %s171
      %p180 = scmp.eq.s32.totalorder %s27, 1
      %p181 = por %p179, %p180
      %p182 = scmp.ne.s32.totalorder %s171, %s172
      %p183 = scmp.eq.s32.totalorder %s27, 0
      %p184 = por %p182, %p183
      %p185 = scmp.ne.s32.totalorder %s171, %s172
      %p186 = scmp.eq.s32.totalorder %s28, 1
      %p187 = por %p185, %p186
      %p189 = scmp.ne.s32.totalorder %s172, %s188
      %p190 = scmp.eq.s32.totalorder %s28, 0
      %p191 = por %p189, %p190
      %p192 = scmp.le.s32.totalorder 1, %s22
      %p193 = scmp.lt.s32.totalorder %s22, 3
      %p194 = pnand %p192, %p193
      %p195 = pneg %p194
      // Predicated region
      $region9: #{joint_gru_ode_cell.1} parent=5 // pred_check
        _
      $region10: #{joint_gru_ode_cell.1} parent=5 // pred_check_branch
        %197 = sbr.rel (%p194) target = $region12
      $region11: #{joint_gru_ode_cell.1} parent=5 // pred_region
        %s198 = ssub.s32 %s22, 1
        // Predicated region
        $region13: #{joint_gru_ode_cell.1} parent=11 // pred_check
          %p199 = pneg %p69
        $region14: #{joint_gru_ode_cell.1} parent=11 // pred_check_branch
          %201 = sbr.rel (%p199) target = $region16
        $region15: #{joint_gru_ode_cell.1} parent=11 // pred_region
          %203 = vsyncadd [#allocation6], 0
          %s204 = sshll.u32 %s1, 4
          %s205 = int_to_ptr.hbm [resolvable:$true] %s204
          %s206 = sshll.u32 [#allocation5], 4
          %s207 = int_to_ptr.vmem [resolvable:$true] %s206
          %212 = dma.hbm_to_vmem [thread:$0]  %s205, 512, %s207, [#allocation6], 128, 128, 8
        $region16: #{joint_gru_ode_cell.1} parent=11 // pred_fallthru
          _
        // Predicated region
        $region17: #{joint_gru_ode_cell.1} parent=11 // pred_check
          %p213 = pneg %p90
        $region18: #{joint_gru_ode_cell.1} parent=11 // pred_check_branch
          %215 = sbr.rel (%p213) target = $region20
        $region19: #{joint_gru_ode_cell.1} parent=11 // pred_region
          %217 = vsyncadd [#allocation6], 0
          %s218 = sshll.u32 %s2, 4
          %s219 = int_to_ptr.hbm [resolvable:$true] %s218
          %s220 = sshll.u32 [#allocation7], 4
          %s221 = int_to_ptr.vmem [resolvable:$true] %s220
          %226 = dma.hbm_to_vmem [thread:$0]  %s219, 512, %s221, [#allocation6], 128, 128, 8
        $region20: #{joint_gru_ode_cell.1} parent=11 // pred_fallthru
          _
        // Predicated region
        $region21: #{joint_gru_ode_cell.1} parent=11 // pred_check
          %p227 = pneg %p111
        $region22: #{joint_gru_ode_cell.1} parent=11 // pred_check_branch
          %229 = sbr.rel (%p227) target = $region24
        $region23: #{joint_gru_ode_cell.1} parent=11 // pred_region
          _
        $region24: #{joint_gru_ode_cell.1} parent=11 // pred_fallthru
          _
        // Predicated region
        $region25: #{joint_gru_ode_cell.1} parent=11 // pred_check
          %p230 = pneg %p132
        $region26: #{joint_gru_ode_cell.1} parent=11 // pred_check_branch
          %232 = sbr.rel (%p230) target = $region28
        $region27: #{joint_gru_ode_cell.1} parent=11 // pred_region
          _
        $region28: #{joint_gru_ode_cell.1} parent=11 // pred_fallthru
          _
      $region12: #{joint_gru_ode_cell.1} parent=5 // pred_fallthru
        _
      %p233 = scmp.lt.s32.totalorder %s22, 2
      // Predicated region
      $region29: #{joint_gru_ode_cell.1} parent=5 // pred_check
        %p234 = pneg %p233
      $region30: #{joint_gru_ode_cell.1} parent=5 // pred_check_branch
        %236 = sbr.rel (%p234) target = $region32
      $region31: #{joint_gru_ode_cell.1} parent=5 // pred_region
        // Predicated region
        $region33: #{joint_gru_ode_cell.1} parent=31 // pred_check
          %p237 = pneg %p42
        $region34: #{joint_gru_ode_cell.1} parent=31 // pred_check_branch
          %239 = sbr.rel (%p237) target = $region36
        $region35: #{joint_gru_ode_cell.1} parent=31 // pred_region
          %s240 = sand.u32 %s32, 1
          %s241 = scalar_lea.sflag [#allocation3], %s240
          %s242 = sand.u32 %s32, 1
          %s243 = smul.addr %s242, 8
          %s244 = scalar_lea.vmem [#allocation2], %s243
          %246 = vsyncadd %s241, 0
          %s247 = smul.addr %s22, 8
          %s248 = scalar_lea.hbm %s0, %s247
          %s250 = sshll.u32 %s248, 4
          %s251 = int_to_ptr.hbm [resolvable:$true] %s250
          %s252 = sshll.u32 %s244, 4
          %s253 = int_to_ptr.vmem [resolvable:$true] %s252
          %255 = dma.hbm_to_vmem [thread:$0]  %s251, 128, %s253, %s241
        $region36: #{joint_gru_ode_cell.1} parent=31 // pred_fallthru
          _
        // Predicated region
        $region37: #{joint_gru_ode_cell.1} parent=31 // pred_check
          %p256 = pneg %p152
        $region38: #{joint_gru_ode_cell.1} parent=31 // pred_check_branch
          %258 = sbr.rel (%p256) target = $region40
        $region39: #{joint_gru_ode_cell.1} parent=31 // pred_region
          %s259 = sand.u32 %s142, 1
          %s260 = scalar_lea.sflag [#allocation9], %s259
          %s261 = sand.u32 %s142, 1
          %s262 = smul.addr %s261, 8
          %s263 = scalar_lea.vmem [#allocation8], %s262
          %265 = vsyncadd %s260, 0
          %s266 = smul.addr %s22, 8
          %s267 = scalar_lea.hbm %s5, %s266
          %s269 = sshll.u32 %s267, 4
          %s270 = int_to_ptr.hbm [resolvable:$true] %s269
          %s271 = sshll.u32 %s263, 4
          %s272 = int_to_ptr.vmem [resolvable:$true] %s271
          %274 = dma.hbm_to_vmem [thread:$0]  %s270, 128, %s272, %s260
        $region40: #{joint_gru_ode_cell.1} parent=31 // pred_fallthru
          _
      $region32: #{joint_gru_ode_cell.1} parent=5 // pred_fallthru
        _
      %p275 = scmp.le.s32.totalorder 1, %s22
      %p276 = scmp.lt.s32.totalorder %s22, 3
      %p277 = pnand %p275, %p276
      %p278 = pneg %p277
      // Predicated region
      $region41: #{joint_gru_ode_cell.1} parent=5 // pred_check
        _
      $region42: #{joint_gru_ode_cell.1} parent=5 // pred_check_branch
        %280 = sbr.rel (%p277) target = $region44
      $region43: #{joint_gru_ode_cell.1} parent=5 // pred_region
        %s281 = ssub.s32 %s22, 1
        %s282 = sand.u32 %s35, 1
        %s283 = scalar_lea.sflag [#allocation3], %s282
        %s284 = sand.u32 %s35, 1
        %s285 = smul.addr %s284, 8
        %s286 = scalar_lea.vmem [#allocation2], %s285
        // Predicated region
        $region45: #{joint_gru_ode_cell.1} parent=43 // pred_check
          %p287 = pneg %p48
        $region46: #{joint_gru_ode_cell.1} parent=43 // pred_check_branch
          %289 = sbr.rel (%p287) target = $region48
        $region47: #{joint_gru_ode_cell.1} parent=43 // pred_region
          %291 = dma.done %s283, 128
        $region48: #{joint_gru_ode_cell.1} parent=43 // pred_fallthru
          _
        // Predicated region
        $region49: #{joint_gru_ode_cell.1} parent=43 // pred_check
          %p292 = pneg %p69
        $region50: #{joint_gru_ode_cell.1} parent=43 // pred_check_branch
          %294 = sbr.rel (%p292) target = $region52
        $region51: #{joint_gru_ode_cell.1} parent=43 // pred_region
          %296 = dma.done [#allocation6], 512
        $region52: #{joint_gru_ode_cell.1} parent=43 // pred_fallthru
          _
        // Predicated region
        $region53: #{joint_gru_ode_cell.1} parent=43 // pred_check
          %p297 = pneg %p90
        $region54: #{joint_gru_ode_cell.1} parent=43 // pred_check_branch
          %299 = sbr.rel (%p297) target = $region56
        $region55: #{joint_gru_ode_cell.1} parent=43 // pred_region
          %301 = dma.done [#allocation6], 512
        $region56: #{joint_gru_ode_cell.1} parent=43 // pred_fallthru
          _
        %s302 = sand.u32 %s145, 1
        %s303 = scalar_lea.sflag [#allocation9], %s302
        %s304 = sand.u32 %s145, 1
        %s305 = smul.addr %s304, 8
        %s306 = scalar_lea.vmem [#allocation8], %s305
        // Predicated region
        $region57: #{joint_gru_ode_cell.1} parent=43 // pred_check
          %p307 = pneg %p158
        $region58: #{joint_gru_ode_cell.1} parent=43 // pred_check_branch
          %309 = sbr.rel (%p307) target = $region60
        $region59: #{joint_gru_ode_cell.1} parent=43 // pred_region
          %311 = dma.done %s303, 128
        $region60: #{joint_gru_ode_cell.1} parent=43 // pred_fallthru
          _
        %s312 = sand.u32 %s35, 1
        %s313 = scalar_lea.sflag [#allocation3], %s312
        %s314 = sand.u32 %s35, 1
        %s315 = smul.addr %s314, 8
        %s316 = scalar_lea.vmem [#allocation2], %s315
        %p317 = pneg %p48
        %p318 = pneg %p45
        %p319 = pneg %p69
        %p320 = pneg %p66
        %p321 = pneg %p90
        %p322 = pneg %p87
        %p323 = pneg %p111
        %p324 = pneg %p108
        %p325 = pneg %p132
        %p326 = pneg %p129
        %s327 = sand.u32 %s145, 1
        %s328 = scalar_lea.sflag [#allocation9], %s327
        %s329 = sand.u32 %s145, 1
        %s330 = smul.addr %s329, 8
        %s331 = scalar_lea.vmem [#allocation8], %s330
        %p332 = pneg %p158
        %p333 = pneg %p155
        %p334 = pneg %p184
        %p335 = pneg %p181
        %s336 = sand.u32 %s171, 1
        %s337 = scalar_lea.sflag [#allocation4], %s336
        %s338 = sand.u32 %s171, 1
        %s339 = smul.addr %s338, 8
        %s340 = scalar_lea.vmem [#allocation10], %s339
        %v341 = vld [vmem:[%s286] sm:$0xff]
        %v342 = vld [vmem:[#allocation5] sm:$0xff]
        %v343 = vld [vmem:[#allocation5 + $0x8] sm:$0xff]
        %v344 = vld [vmem:[#allocation5 + $0x10] sm:$0xff]
        %v345 = vld [vmem:[#allocation5 + $0x18] sm:$0xff]
        %v346 = vld [vmem:[#allocation7] sm:$0xff]
        %v347 = vld [vmem:[#allocation7 + $0x8] sm:$0xff]
        %v348 = vld [vmem:[#allocation7 + $0x10] sm:$0xff]
        %v349 = vld [vmem:[#allocation7 + $0x18] sm:$0xff]
        %v350 = vld [vmem:[%s3] sm:$0x1]
        %v351 = vld [vmem:[%s4] sm:$0x1]
        %v352 = vld [vmem:[%s306] sm:$0xff]
        %v354 = vperm.slane %v350, 0
        %vm356 = vcmask 261120
        %v358 = vsel %vm356, %v341, 0
        %360 = vmatpush.msra.mxu0 0.0
        %361 = vmatpush.msra.mxu0 0.0
        %362 = vmatpush.msra.mxu0 0.0
        %363 = vmatpush.msra.mxu0 0.0
        %364 = vmatpush.msra.mxu0 0.0
        %365 = vmatpush.msra.mxu0 0.0
        %366 = vmatpush.msra.mxu0 0.0
        %367 = vmatpush.msra.mxu0 0.0
        %368 = vmatpush.msra.mxu0 0.0
        %369 = vmatpush.msra.mxu0 0.0
        %370 = vmatpush.msra.mxu0 0.0
        %371 = vmatpush.msra.mxu0 0.0
        %372 = vmatpush.msra.mxu0 %v345
        %373 = vmatpush.msra.mxu0 %v344
        %374 = vmatpush.msra.mxu0 %v343
        %375 = vmatpush.msra.mxu0 %v342
        %376 = vmatmul.f32.gmra.mxu0 %v358
        %v377 = vpop.f32.mrf.mxu0
        %v378 = vadd.f32 %v354, %v377
        %379 = vdwg.mxu0
        %v381 = vperm.slane %v351, 0
        %383 = vmatpush.msra.mxu0 0.0
        %384 = vmatpush.msra.mxu0 0.0
        %385 = vmatpush.msra.mxu0 0.0
        %386 = vmatpush.msra.mxu0 0.0
        %387 = vmatpush.msra.mxu0 0.0
        %388 = vmatpush.msra.mxu0 0.0
        %389 = vmatpush.msra.mxu0 0.0
        %390 = vmatpush.msra.mxu0 0.0
        %391 = vmatpush.msra.mxu0 0.0
        %392 = vmatpush.msra.mxu0 0.0
        %393 = vmatpush.msra.mxu0 0.0
        %394 = vmatpush.msra.mxu0 0.0
        %395 = vmatpush.msra.mxu0 %v349
        %396 = vmatpush.msra.mxu0 %v348
        %397 = vmatpush.msra.mxu0 %v347
        %398 = vmatpush.msra.mxu0 %v346
        %399 = vmatmul.f32.gmra.mxu0 %v358
        %v400 = vpop.f32.mrf.mxu0
        %v401 = vadd.f32 %v381, %v400
        %402 = vdwg.mxu0
        %v403 = vsub.f32 0.0, %v378
        %v404 = vxor.u32 %v403, 2147483648
        %v405 = vmul.f32 %v404, 1.442695
        %v406 = vpow.pop %v405
        %v407 = vadd.f32 %v406, 1.0
        %v408 = vrcp.pop %v407
        %v409 = vmul.f32 %v407, %v408
        %v410 = vsub.f32 1.0, %v409
        %v411 = vmul.f32 %v408, %v410
        %v412 = vadd.f32 %v408, %v411
        %vm413 = vweird.f32 %v407
        %vm414 = vweird.f32 %v408
        %vm415 = vmor %vm413, %vm414
        %v416 = vsel %vm415, %v408, %v412
        %v417 = vand.u32 2147483647, %v407
        %vm418 = vcmp.eq.f32.partialorder %v417, 8.507059e+37
        %v419 = vand.u32 %v407, 2147483648
        %v420 = vor.u32 1.1754944e-38, %v419
        %v421 = vsel %vm418, %v420, %v416
        %v422 = vmul.f32 1.0, %v421
        %v423 = vtanh.pop %v401
        %v424 = vsub.f32 %v423, %v352
        %v425 = vmul.f32 %v422, %v424
        %426 = vst.msk [vmem:[%s340] sm:$0xff] %vm356, %v425
        %s427 = sand.u32 %s171, 1
        %s428 = scalar_lea.sflag [#allocation4], %s427
        %s429 = sand.u32 %s171, 1
        %s430 = smul.addr %s429, 8
        %s431 = scalar_lea.vmem [#allocation10], %s430
        // Predicated region
        $region61: #{joint_gru_ode_cell.1} parent=43 // pred_check
          %p432 = pneg %p181
        $region62: #{joint_gru_ode_cell.1} parent=43 // pred_check_branch
          %434 = sbr.rel (%p432) target = $region64
        $region63: #{joint_gru_ode_cell.1} parent=43 // pred_region
          %436 = vsyncadd %s428, 0
          %s437 = smul.addr %s27, 8
          %s438 = scalar_lea.hbm %s6, %s437
          %s440 = sshll.u32 %s431, 4
          %s441 = int_to_ptr.vmem [resolvable:$true] %s440
          %s442 = sshll.u32 %s438, 4
          %s443 = int_to_ptr.hbm [resolvable:$true] %s442
          %445 = dma.vmem_to_hbm [thread:$0]  %s441, 128, %s443, %s428
        $region64: #{joint_gru_ode_cell.1} parent=43 // pred_fallthru
          _
      $region44: #{joint_gru_ode_cell.1} parent=5 // pred_fallthru
        _
      %p446 = scmp.le.s32.totalorder 2, %s22
      // Predicated region
      $region65: #{joint_gru_ode_cell.1} parent=5 // pred_check
        %p447 = pneg %p446
      $region66: #{joint_gru_ode_cell.1} parent=5 // pred_check_branch
        %449 = sbr.rel (%p447) target = $region68
      $region67: #{joint_gru_ode_cell.1} parent=5 // pred_region
        %s450 = ssub.s32 %s22, 2
        // Predicated region
        $region69: #{joint_gru_ode_cell.1} parent=67 // pred_check
          %p451 = pneg %p187
        $region70: #{joint_gru_ode_cell.1} parent=67 // pred_check_branch
          %453 = sbr.rel (%p451) target = $region72
        $region71: #{joint_gru_ode_cell.1} parent=67 // pred_region
          %s454 = sand.u32 %s172, 1
          %s455 = scalar_lea.sflag [#allocation4], %s454
          %s456 = sand.u32 %s172, 1
          %s457 = smul.addr %s456, 8
          %s458 = scalar_lea.vmem [#allocation10], %s457
          %460 = dma.done %s455, 128
        $region72: #{joint_gru_ode_cell.1} parent=67 // pred_fallthru
          _
      $region68: #{joint_gru_ode_cell.1} parent=5 // pred_fallthru
        _
    $region6: #{joint_gru_ode_cell.1} parent=1 // loop_footer
      %s26 = sadd.s32 1, %s22
    $region7: #{joint_gru_ode_cell.1} parent=1 // loop_footer_branch
      %21 = sbr.rel target = $region3
    $region8: #{joint_gru_ode_cell.1} parent=1 // loop_exit
      _
    %461 = vsyncpa [#allocation3], 1
    %s462 = scalar_lea.sflag [#allocation3], 1
    %463 = vsyncpa %s462, 1
    %464 = vsyncpa [#allocation6], 1
    %465 = vsyncpa [#allocation9], 1
    %s466 = scalar_lea.sflag [#allocation9], 1
    %467 = vsyncpa %s466, 1
    %468 = vsyncpa [#allocation4], 1
    %s469 = scalar_lea.sflag [#allocation4], 1
    %470 = vsyncpa %s469, 1

</llo_original>
